<compile_context>
chip_gen: v7x
topology: tpu7x:2x2x1
jax: 0.10.0
libtpu: 0.0.40
codegen_flags: <defaults>
</compile_context>

<pallas_src>
import functools

import jax
import jax.numpy as jnp
import numpy as np
from jax.experimental import pallas as pl
from jax.experimental.pallas import tpu as pltpu


def _round_up(x, m):
    return (x + m - 1) // m * m


def _cdiv(a, b):
    return (a + b - 1) // b


@functools.lru_cache(maxsize=None)
def _rfft_basis_np(L, f_blk):
    """hi/lo bf16 split of the ortho-rfft basis, grouped per frequency block.

    Returns two numpy (L, nf*2*f_blk) bfloat16 arrays.  Frequency group g
    occupies columns [g*2*f_blk, (g+1)*2*f_blk) laid out as [cos_g | -sin_g],
    so one lane-dense block of width 2*f_blk carries both the real and
    imaginary basis columns for that group.  Columns past F = L//2+1 are zero
    (they contribute exactly 0 to both the sum and the max).
    """
    F = L // 2 + 1
    f_pad = _round_up(F, 128)
    nf = _cdiv(f_pad, f_blk)
    n = np.arange(L, dtype=np.int64)[:, None]
    scale = 1.0 / np.sqrt(float(L))
    full = np.zeros((L, nf, 2, f_blk), dtype=np.float64)
    for g in range(nf):
        k0 = g * f_blk
        k1 = min(k0 + f_blk, F)
        if k1 <= k0:
            continue
        k = np.arange(k0, k1, dtype=np.int64)[None, :]
        ang = 2.0 * np.pi * ((n * k) % L).astype(np.float64) / float(L)  # exact reduction
        full[:, g, 0, : k1 - k0] = np.cos(ang) * scale
        full[:, g, 1, : k1 - k0] = -np.sin(ang) * scale
    full = full.reshape(L, nf * 2 * f_blk)
    hi = full.astype(np.float32).astype(jnp.bfloat16)
    lo = (full - hi.astype(np.float64)).astype(np.float32).astype(jnp.bfloat16)
    return hi, lo


def _ffl_tile_kernel(pred_ref, target_ref, bhi_ref, blo_ref, sum_ref, max_ref,
                     *, alpha, f_blk, tile_m, m_total, mask_rows):
    j = pl.program_id(1)

    diff = pred_ref[...].astype(jnp.float32) - target_ref[...].astype(jnp.float32)
    if mask_rows:
        # Ragged last M tile: rows >= m_total come from a clamped DMA (stale
        # VMEM); select() them to 0 so they contribute nothing to sum or max.
        row = (jax.lax.broadcasted_iota(jnp.int32, diff.shape, 0)
               + pl.program_id(0) * tile_m)
        diff = jnp.where(row < m_total, diff, 0.0)

    # bf16x3 split matmul: near-f32 accuracy at the native bf16 MXU rate.
    d_hi = diff.astype(jnp.bfloat16)
    d_lo = (diff - d_hi.astype(jnp.float32)).astype(jnp.bfloat16)
    bhi = bhi_ref[...]
    blo = blo_ref[...]
    ri = (jnp.dot(d_hi, bhi, preferred_element_type=jnp.float32)
          + jnp.dot(d_lo, bhi, preferred_element_type=jnp.float32)
          + jnp.dot(d_hi, blo, preferred_element_type=jnp.float32))
    re = ri[:, :f_blk]
    im = ri[:, f_blk:]
    d = re * re + im * im          # 0 for masked rows and zero-padded freq columns

    # numerator = d^(1 + alpha/2); specialize to avoid general pow (EUP exp+log).
    if alpha == 1.0:
        num = d * jnp.sqrt(d)
    elif alpha == 2.0:
        num = d * d
    elif alpha == 0.0:
        num = d
    else:
        p = jnp.float32(1.0 + 0.5 * alpha)
        num = jnp.where(d > 0.0, d ** p, 0.0)   # guard pow at exactly 0

    part_sum = jnp.sum(num)
    part_max = jnp.max(d)

    # Output blocks are indexed by i only, so they stay VMEM-resident across the
    # frequency axis j and act as accumulators.
    @pl.when(j == 0)
    def _():
        sum_ref[...] = jnp.zeros_like(sum_ref)
        max_ref[...] = jnp.zeros_like(max_ref)

    sum_ref[...] = sum_ref[...] + part_sum
    max_ref[...] = jnp.maximum(max_ref[...], part_max)


def _vmem_bytes(tile_m, f_blk, f_pad, L):
    """Conservative per-call VMEM working-set estimate (bytes)."""
    nf = _cdiv(f_pad, f_blk)
    basis_bufs = 1 if nf == 1 else 2               # Buffered(1) when resident, else streamed
    inputs = 2 * 2 * tile_m * L * 4                # pred+target tiles, double-buffered, f32
    basis = basis_bufs * 2 * (L * 2 * f_blk) * 2   # hi+lo bf16 blocks
    splits = 2 * tile_m * L * 2                    # d_hi/d_lo bf16
    work = 6 * tile_m * 2 * f_blk * 4              # ri / re / im / d / num headroom
    outs = 2 * 2 * 128 * 4
    return inputs + basis + splits + work + outs


def _vmem_capacity_bytes():
    try:
        return int(pltpu.get_tpu_info().vmem_capacity_bytes)
    except Exception:
        return 64 * 2 ** 20                        # conservative (v7x-sized) fallback


def focal_frequency_loss(pred, target, *, loss_weight=1.0, alpha=1.0,
                         tile_m=None, f_block=None):
    """pred, target: (batch, nvars, seq_len) float32. Returns scalar loss.

    Implements MyFocalFrequencyLoss with default flags (patch_factor=1,
    ave_spectrum=False, log_matrix=False, batch_matrix=False, is_freq=False).
    """
    if alpha < 0.0:
        # TODO(synk): negative alpha breaks the sum/max reformulation (w > 1).
        raise NotImplementedError("alpha must be >= 0")

    B, N, L = pred.shape
    M = B * N
    F = L // 2 + 1
    f_pad = _round_up(F, 128)

    # Generation-aware VMEM budget (v5e/v6e: 128 MiB physical, v7x: 64 MiB).
    cap = _vmem_capacity_bytes()
    budget = int(cap * 0.85)                       # headroom for Mosaic internal scratch

    # Balanced M tiles (<= 256 rows, multiple of 8). The ragged tail is masked
    # in-kernel, so the wrapper never pads/copies the inputs in HBM.
    if tile_m is None:
        tile_m = _round_up(_cdiv(M, max(1, _cdiv(M, 256))), 8)
    tile_m = max(8, _round_up(int(tile_m), 8))
    tile_m = min(tile_m, _round_up(M, 8))

    # Frequency tiling: a single VMEM-resident basis block when it fits the
    # budget, otherwise tile the frequency axis (large L on v7x's 64 MiB VMEM).
    if f_block is not None:
        f_blk = max(128, _round_up(int(f_block), 128))
    else:
        f_blk = f_pad
        while _vmem_bytes(tile_m, f_blk, f_pad, L) > budget:
            if f_blk > 128:
                nf_next = _cdiv(f_pad, f_blk) + 1
                f_blk = max(128, min(f_blk - 128,
                                     _round_up(_cdiv(f_pad, nf_next), 128)))
            elif tile_m > 8:
                tile_m = max(8, _round_up(tile_m // 2, 8))
            else:
                break
    nf = _cdiv(f_pad, f_blk)
    num_m_tiles = _cdiv(M, tile_m)

    p2d = pred.reshape(M, L).astype(jnp.float32)    # reshape is free; no jnp.pad copy
    t2d = target.reshape(M, L).astype(jnp.float32)

    bhi_np, blo_np = _rfft_basis_np(L, f_blk)       # cached numpy, converted per call
    bhi = jnp.asarray(bhi_np)
    blo = jnp.asarray(blo_np)

    vmem_limit = min(int(cap * 0.9),
                     max(32 * 2 ** 20,
                         int(1.2 * _vmem_bytes(tile_m, f_blk, f_pad, L))))

    width = nf * 2 * f_blk
    m_work = num_m_tiles * tile_m
    flops = 3 * 2 * m_work * L * width + 8 * m_work * f_pad
    basis_bytes = 2 * L * width * 2
    bytes_acc = (4 * 2 * M * L
                 + basis_bytes * (1 if nf == 1 else num_m_tiles)
                 + 2 * num_m_tiles * 128 * 4)

    # Single-buffer the basis when it is resident (constant block index); stream
    # it double-buffered when the frequency axis is tiled.
    # TODO(synk): in the streamed (nf > 1) regime the basis is re-fetched once
    # per M tile; for huge-L / small-M cases a flipped grid order would be cheaper.
    basis_mode = pl.Buffered(1) if nf == 1 else pl.Buffered(2)

    kernel = functools.partial(
        _ffl_tile_kernel, alpha=float(alpha), f_blk=f_blk, tile_m=tile_m,
        m_total=M, mask_rows=(M % tile_m != 0))

    sums, maxs = pl.pallas_call(
        kernel,
        out_shape=(
            jax.ShapeDtypeStruct((num_m_tiles, 1, 128), jnp.float32),
            jax.ShapeDtypeStruct((num_m_tiles, 1, 128), jnp.float32),
        ),
        grid=(num_m_tiles, nf),
        in_specs=[
            pl.BlockSpec((tile_m, L), lambda i, j: (i, 0)),      # pred tile
            pl.BlockSpec((tile_m, L), lambda i, j: (i, 0)),      # target tile
            pl.BlockSpec((L, 2 * f_blk), lambda i, j: (0, j),    # basis hi
                         pipeline_mode=basis_mode),
            pl.BlockSpec((L, 2 * f_blk), lambda i, j: (0, j),    # basis lo
                         pipeline_mode=basis_mode),
        ],
        out_specs=(
            pl.BlockSpec((1, 1, 128), lambda i, j: (i, 0, 0)),   # partial sums
            pl.BlockSpec((1, 1, 128), lambda i, j: (i, 0, 0)),   # partial maxes
        ),
        compiler_params=pltpu.CompilerParams(
            dimension_semantics=("parallel", "arbitrary"),
            vmem_limit_bytes=vmem_limit,
        ),
        cost_estimate=pl.CostEstimate(
            flops=int(flops),
            transcendentals=int(m_work * f_pad),
            bytes_accessed=int(bytes_acc),
        ),
    )(p2d, t2d, bhi, blo)

    total = jnp.sum(sums[:, 0, 0])
    mx = jnp.max(maxs[:, 0, 0])

    # max(w) = max(sqrt(d))^alpha = max(d)^(alpha/2); w <= 1 automatically so the
    # reference clamp is a no-op, and NaN->0 only triggers when max(d) == 0.
    if alpha == 1.0:
        max_w = jnp.sqrt(mx)
    elif alpha == 2.0:
        max_w = mx
    elif alpha == 0.0:
        max_w = jnp.float32(1.0)
    else:
        max_w = mx ** jnp.float32(0.5 * alpha)

    denom = jnp.float32(M * F)                     # true (unpadded) element count
    safe_w = jnp.where(max_w > 0.0, max_w, jnp.float32(1.0))
    loss = jnp.where(max_w > 0.0, total / (safe_w * denom), jnp.float32(0.0))
    return loss * jnp.float32(loss_weight)


def _reference_loss(pred, target, loss_weight=1.0, alpha=1.0):
    """Pure-JAX reference mirroring the PyTorch module (default flags)."""
    B, N, L = pred.shape
    pf = jnp.fft.rfft(pred.reshape(B * N, L), norm="ortho")
    tf = jnp.fft.rfft(target.reshape(B * N, L), norm="ortho")
    d_re = pf.real - tf.real
    d_im = pf.imag - tf.imag
    dist = d_re ** 2 + d_im ** 2
    w = jnp.sqrt(dist) ** alpha
    w = w / jnp.max(w)
    w = jnp.where(jnp.isnan(w), 0.0, w)
    w = jnp.clip(w, 0.0, 1.0)
    return jnp.mean(w * dist) * loss_weight


if __name__ == "__main__":
    key = jax.random.PRNGKey(0)
    k1, k2, k3, k4 = jax.random.split(key, 4)

    # bf16x3 split matmul typically agrees with the f32 FFT reference to ~1e-5
    # relative; use 2e-4 rtol for margin.
    RTOL, ATOL = 2e-4, 1e-6

    # Case 1: module's natural small shape (batch=2, nvars=4, seq_len=8).
    batch, nvars, seq_len = 2, 4, 8
    pred = jax.random.normal(k1, (batch, nvars, seq_len), dtype=jnp.float32)
    target = jax.random.normal(k2, (batch, nvars, seq_len), dtype=jnp.float32)
    loss = jax.block_until_ready(focal_frequency_loss(pred, target,
                                                      loss_weight=1.0, alpha=1.0))
    ref = jax.block_until_ready(_reference_loss(pred, target))
    assert jnp.allclose(loss, ref, rtol=RTOL, atol=ATOL), (loss, ref)

    # Case 2: alpha=2 specialization.
    loss2 = jax.block_until_ready(focal_frequency_loss(pred, target, alpha=2.0))
    ref2 = jax.block_until_ready(_reference_loss(pred, target, alpha=2.0))
    assert jnp.allclose(loss2, ref2, rtol=RTOL, atol=ATOL), (loss2, ref2)

    # Case 3: multi-tile M grid with a ragged (masked) last tile, no padding
    # (M=15 -> tiles of 8, last tile has 7 valid rows), non-pow2 L=40.
    pred3 = jax.random.normal(k3, (3, 5, 40), dtype=jnp.float32)
    target3 = jax.random.normal(k4, (3, 5, 40), dtype=jnp.float32)
    loss3 = jax.block_until_ready(focal_frequency_loss(pred3, target3, tile_m=8))
    ref3 = jax.block_until_ready(_reference_loss(pred3, target3))
    assert jnp.allclose(loss3, ref3, rtol=RTOL, atol=ATOL), (loss3, ref3)

    # Case 4: force frequency tiling (L=384 -> F=193 -> two 128-wide blocks) to
    # exercise the streamed-basis / accumulate-over-j path used for large L.
    k5, k6 = jax.random.split(k4)
    pred4 = jax.random.normal(k5, (2, 3, 384), dtype=jnp.float32)
    target4 = jax.random.normal(k6, (2, 3, 384), dtype=jnp.float32)
    loss4 = jax.block_until_ready(focal_frequency_loss(pred4, target4, f_block=128))
    ref4 = jax.block_until_ready(_reference_loss(pred4, target4))
    assert jnp.allclose(loss4, ref4, rtol=RTOL, atol=ATOL), (loss4, ref4)

    print("KERNEL_OK")
</pallas_src>

<mosaic_0001>
module attributes {stable_mosaic.version = 11 : i64} {
  func.func @_ffl_tile_kernel(%arg0: i32, %arg1: i32, %arg2: memref<8x8xf32, #tpu.memory_space<vmem>>, %arg3: memref<8x8xf32, #tpu.memory_space<vmem>>, %arg4: memref<8x256xbf16, #tpu.memory_space<vmem>>, %arg5: memref<8x256xbf16, #tpu.memory_space<vmem>>, %arg6: memref<1x1x128xf32, #tpu.memory_space<vmem>>, %arg7: memref<1x1x128xf32, #tpu.memory_space<vmem>>) attributes {dimension_semantics = [#tpu.dimension_semantics<parallel>, #tpu.dimension_semantics<arbitrary>], iteration_bounds = array<i64: 1, 1>, scalar_prefetch = 0 : i64, scratch_operands = 0 : i64, tpu.core_type = #tpu.core_type<tc>, window_params = [{transform_indices = @transform_0, window_bounds = array<i64: 8, 8>}, {transform_indices = @transform_1, window_bounds = array<i64: 8, 8>}, {pipeline_mode = #tpu.pipeline_mode<synchronous>, transform_indices = @transform_2, window_bounds = array<i64: 8, 256>}, {pipeline_mode = #tpu.pipeline_mode<synchronous>, transform_indices = @transform_3, window_bounds = array<i64: 8, 256>}, {transform_indices = @transform_4, window_bounds = array<i64: 1, 1, 128>}, {transform_indices = @transform_5, window_bounds = array<i64: 1, 1, 128>}]} {
    %c0 = arith.constant 0 : index
    %c0_0 = arith.constant 0 : index
    %0 = vector.load %arg2[%c0, %c0_0] : memref<8x8xf32, #tpu.memory_space<vmem>>, vector<8x8xf32>
    %c0_1 = arith.constant 0 : index
    %c0_2 = arith.constant 0 : index
    %1 = vector.load %arg3[%c0_1, %c0_2] : memref<8x8xf32, #tpu.memory_space<vmem>>, vector<8x8xf32>
    %2 = arith.subf %0, %1 : vector<8x8xf32>
    %3 = arith.truncf %2 : vector<8x8xf32> to vector<8x8xbf16>
    %4 = arith.extf %3 : vector<8x8xbf16> to vector<8x8xf32>
    %5 = arith.subf %2, %4 : vector<8x8xf32>
    %6 = arith.truncf %5 : vector<8x8xf32> to vector<8x8xbf16>
    %c0_3 = arith.constant 0 : index
    %c0_4 = arith.constant 0 : index
    %7 = vector.load %arg4[%c0_3, %c0_4] : memref<8x256xbf16, #tpu.memory_space<vmem>>, vector<8x256xbf16>
    %c0_5 = arith.constant 0 : index
    %c0_6 = arith.constant 0 : index
    %8 = vector.load %arg5[%c0_5, %c0_6] : memref<8x256xbf16, #tpu.memory_space<vmem>>, vector<8x256xbf16>
    %cst = arith.constant dense<0.000000e+00> : vector<8x256xf32>
    %9 = tpu.matmul %3, %7, %cst {dimension_numbers = #tpu.dot_dimension_numbers<[1], [0], [0], [1], [0, 0, 1, 1], [], []>} : vector<8x8xbf16>, vector<8x256xbf16>, vector<8x256xf32> -> vector<8x256xf32>
    %cst_7 = arith.constant dense<0.000000e+00> : vector<8x256xf32>
    %10 = tpu.matmul %6, %7, %cst_7 {dimension_numbers = #tpu.dot_dimension_numbers<[1], [0], [0], [1], [0, 0, 1, 1], [], []>} : vector<8x8xbf16>, vector<8x256xbf16>, vector<8x256xf32> -> vector<8x256xf32>
    %11 = arith.addf %9, %10 : vector<8x256xf32>
    %cst_8 = arith.constant dense<0.000000e+00> : vector<8x256xf32>
    %12 = tpu.matmul %3, %8, %cst_8 {dimension_numbers = #tpu.dot_dimension_numbers<[1], [0], [0], [1], [0, 0, 1, 1], [], []>} : vector<8x8xbf16>, vector<8x256xbf16>, vector<8x256xf32> -> vector<8x256xf32>
    %13 = arith.addf %11, %12 : vector<8x256xf32>
    %14 = vector.extract_strided_slice %13 {offsets = [0, 0], sizes = [8, 128], strides = [1, 1]} : vector<8x256xf32> to vector<8x128xf32>
    %15 = vector.extract_strided_slice %13 {offsets = [0, 128], sizes = [8, 128], strides = [1, 1]} : vector<8x256xf32> to vector<8x128xf32>
    %16 = arith.mulf %14, %14 : vector<8x128xf32>
    %17 = arith.mulf %15, %15 : vector<8x128xf32>
    %18 = arith.addf %16, %17 : vector<8x128xf32>
    %19 = math.sqrt %18 : vector<8x128xf32>
    %20 = arith.mulf %18, %19 : vector<8x128xf32>
    %21 = vector.shape_cast %20 : vector<8x128xf32> to vector<1x8x128xf32>
    %cst_9 = arith.constant dense<0.000000e+00> : vector<1xf32>
    %22 = vector.multi_reduction <add>, %21, %cst_9 [1, 2] : vector<1x8x128xf32> to vector<1xf32>
    %23 = vector.shape_cast %22 : vector<1xf32> to vector<1x1x1xf32>
    %24 = vector.extract %23[0, 0, 0] : f32 from vector<1x1x1xf32>
    %25 = vector.shape_cast %18 : vector<8x128xf32> to vector<1x8x128xf32>
    %cst_10 = arith.constant dense<0xFF800000> : vector<1xf32>
    %26 = vector.multi_reduction <maximumf>, %25, %cst_10 [1, 2] : vector<1x8x128xf32> to vector<1xf32>
    %27 = vector.shape_cast %26 : vector<1xf32> to vector<1x1x1xf32>
    %28 = vector.extract %27[0, 0, 0] : f32 from vector<1x1x1xf32>
    %c0_i32 = arith.constant 0 : i32
    %29 = arith.cmpi eq, %arg1, %c0_i32 : i32
    %30 = arith.extui %29 : i1 to i32
    %c0_i32_11 = arith.constant 0 : i32
    %31 = arith.cmpi ne, %30, %c0_i32_11 : i32
    scf.if %31 {
      %cst_24 = arith.constant 0.000000e+00 : f32
      %40 = vector.broadcast %cst_24 : f32 to vector<1x1x128xf32>
      %c0_25 = arith.constant 0 : index
      %c0_26 = arith.constant 0 : index
      %c0_27 = arith.constant 0 : index
      %41 = vector.load %arg6[%c0_25, %c0_26, %c0_27] : memref<1x1x128xf32, #tpu.memory_space<vmem>>, vector<1x1x128xf32>
      tpu.vector_store %arg6[%c0_25, %c0_26, %c0_27], %40 {strides = array<i32>} : memref<1x1x128xf32, #tpu.memory_space<vmem>>, vector<1x1x128xf32>,
      %cst_28 = arith.constant 0.000000e+00 : f32
      %42 = vector.broadcast %cst_28 : f32 to vector<1x1x128xf32>
      %c0_29 = arith.constant 0 : index
      %c0_30 = arith.constant 0 : index
      %c0_31 = arith.constant 0 : index
      %43 = vector.load %arg7[%c0_29, %c0_30, %c0_31] : memref<1x1x128xf32, #tpu.memory_space<vmem>>, vector<1x1x128xf32>
      tpu.vector_store %arg7[%c0_29, %c0_30, %c0_31], %42 {strides = array<i32>} : memref<1x1x128xf32, #tpu.memory_space<vmem>>, vector<1x1x128xf32>,
    } else {
    }
    %c0_12 = arith.constant 0 : index
    %c0_13 = arith.constant 0 : index
    %c0_14 = arith.constant 0 : index
    %32 = vector.load %arg6[%c0_12, %c0_13, %c0_14] : memref<1x1x128xf32, #tpu.memory_space<vmem>>, vector<1x1x128xf32>
    %33 = vector.broadcast %24 : f32 to vector<1x1x128xf32>
    %34 = arith.addf %32, %33 : vector<1x1x128xf32>
    %c0_15 = arith.constant 0 : index
    %c0_16 = arith.constant 0 : index
    %c0_17 = arith.constant 0 : index
    %35 = vector.load %arg6[%c0_15, %c0_16, %c0_17] : memref<1x1x128xf32, #tpu.memory_space<vmem>>, vector<1x1x128xf32>
    tpu.vector_store %arg6[%c0_15, %c0_16, %c0_17], %34 {strides = array<i32>} : memref<1x1x128xf32, #tpu.memory_space<vmem>>, vector<1x1x128xf32>,
    %c0_18 = arith.constant 0 : index
    %c0_19 = arith.constant 0 : index
    %c0_20 = arith.constant 0 : index
    %36 = vector.load %arg7[%c0_18, %c0_19, %c0_20] : memref<1x1x128xf32, #tpu.memory_space<vmem>>, vector<1x1x128xf32>
    %37 = vector.broadcast %28 : f32 to vector<1x1x128xf32>
    %38 = arith.maximumf %36, %37 : vector<1x1x128xf32>
    %c0_21 = arith.constant 0 : index
    %c0_22 = arith.constant 0 : index
    %c0_23 = arith.constant 0 : index
    %39 = vector.load %arg7[%c0_21, %c0_22, %c0_23] : memref<1x1x128xf32, #tpu.memory_space<vmem>>, vector<1x1x128xf32>
    tpu.vector_store %arg7[%c0_21, %c0_22, %c0_23], %38 {strides = array<i32>} : memref<1x1x128xf32, #tpu.memory_space<vmem>>, vector<1x1x128xf32>,
    return
  }
  func.func @transform_0(%arg0: i32, %arg1: i32) -> (i32, i32) {
    %c0_i32 = arith.constant 0 : i32
    %c0_i32_0 = arith.constant 0 : i32
    return %arg0, %c0_i32 : i32, i32
  }
  func.func @transform_1(%arg0: i32, %arg1: i32) -> (i32, i32) {
    %c0_i32 = arith.constant 0 : i32
    %c0_i32_0 = arith.constant 0 : i32
    return %arg0, %c0_i32 : i32, i32
  }
  func.func @transform_2(%arg0: i32, %arg1: i32) -> (i32, i32) {
    %c0_i32 = arith.constant 0 : i32
    %c0_i32_0 = arith.constant 0 : i32
    return %c0_i32, %arg1 : i32, i32
  }
  func.func @transform_3(%arg0: i32, %arg1: i32) -> (i32, i32) {
    %c0_i32 = arith.constant 0 : i32
    %c0_i32_0 = arith.constant 0 : i32
    return %c0_i32, %arg1 : i32, i32
  }
  func.func @transform_4(%arg0: i32, %arg1: i32) -> (i32, i32, i32) {
    %c0_i32 = arith.constant 0 : i32
    %c0_i32_0 = arith.constant 0 : i32
    %c0_i32_1 = arith.constant 0 : i32
    return %arg0, %c0_i32, %c0_i32_0 : i32, i32, i32
  }
  func.func @transform_5(%arg0: i32, %arg1: i32) -> (i32, i32, i32) {
    %c0_i32 = arith.constant 0 : i32
    %c0_i32_0 = arith.constant 0 : i32
    %c0_i32_1 = arith.constant 0 : i32
    return %arg0, %c0_i32, %c0_i32_0 : i32, i32, i32
  }
}

</mosaic_0001>

<llo_original>
// kernel: tpu_custom_call.1
$region0: #{tpu_custom_call.1}
  #allocation0 [shape = 'u32[]', space=smem, size = 0x4, offset = 0x4, fixed_abs, tag = 'smem constant byte address 0x4 - core index']
  #allocation1 [shape = 'u32[144,128]{1,0:T(1,128)}', space=vmem, size = 0x12000, scoped, tag = 'internal scratch']
  %s0 = inlined_call_operand.hbm [shape: f32[8,8], index: 0, kind: input, shape index: {}]
  %s1 = inlined_call_operand.hbm [shape: f32[8,8], index: 1, kind: input, shape index: {}]
  %s2 = inlined_call_operand.hbm [shape: bf16[8,256], index: 2, kind: input, shape index: {}]
  %s3 = inlined_call_operand.vmem [shape: bf16[8,256], index: 3, kind: input, shape index: {}]
  %s4 = inlined_call_operand.hbm [shape: f32[1,1,128], index: 4, kind: output, shape index: {0}]
  %s5 = inlined_call_operand.hbm [shape: f32[1,1,128], index: 5, kind: output, shape index: {1}]
  %6 = xla_tuple %s4, %s5
  %s7 = sld [smem:[#allocation0]]
  $region50: #{tpu_custom_call.1} parent=0
    _
  %s9 = ssub.s32 1, %s7
  %s10 = scalar_select 0, %s9, %s7
  $region1: #{tpu_custom_call.1} parent=0
    #allocation2 [shape = 'u8[4096]{0}', space=vmem, size = 0x1000, scoped, tag = 'input window, operand 0, single buffered']
    #allocation3 [shape = 's32[1]{0}', space=sflag, size = 0x4, scoped, tag = 'scoped memory for tpu_custom_call.1']
    #allocation4 [shape = 's32[1]{0}', space=sflag, size = 0x4, scoped, tag = 'scoped memory for tpu_custom_call.1']
    #allocation5 [shape = 'u8[4096]{0}', space=vmem, size = 0x1000, scoped, tag = 'input window, operand 1, single buffered']
    #allocation6 [shape = 's32[1]{0}', space=sflag, size = 0x4, scoped, tag = 'scoped memory for tpu_custom_call.1']
    #allocation7 [shape = 'u8[4096]{0}', space=vmem, size = 0x1000, scoped, tag = 'input window, operand 2, single buffered']
    #allocation8 [shape = 'u8[512]{0}', space=vmem, size = 0x400, scoped, tag = 'output window, operand 0, single buffered']
    #allocation9 [shape = 'u8[512]{0}', space=vmem, size = 0x400, scoped, tag = 'output window, operand 1, single buffered']
    #allocation10 [shape = 's32[1]{0}', space=sflag, size = 0x4, scoped, tag = 'scoped memory for tpu_custom_call.1']
    %11 = vsyncpa [#allocation3], 0
    %12 = vsyncpa [#allocation6], 0
    %13 = vsyncpa [#allocation4], 0
    %14 = vsyncpa [#allocation10], 0
    // Predicated region
    $region2: #{tpu_custom_call.1} parent=1 // pred_check
      _
    $region3: #{tpu_custom_call.1} parent=1 // pred_check_branch
      %16 = sbr.rel (0) target = $region5
    $region4: #{tpu_custom_call.1} parent=1 // pred_region
      %s18 = ssub.s32 128, 128
      %19 = vsyncadd [#allocation3], %s18
      %s21 = sshll.u32 [#allocation2], 4
      %s22 = int_to_ptr.vmem [resolvable:$true] %s21
      %24 = dma.hbm_to_vmem [thread:$0]  %s0, 128, %s22, [#allocation3]
    $region5: #{tpu_custom_call.1} parent=1 // pred_fallthru
      _
    // Predicated region
    $region6: #{tpu_custom_call.1} parent=1 // pred_check
      _
    $region7: #{tpu_custom_call.1} parent=1 // pred_check_branch
      %26 = sbr.rel (0) target = $region9
    $region8: #{tpu_custom_call.1} parent=1 // pred_region
      %s28 = ssub.s32 128, 128
      %29 = vsyncadd [#allocation6], %s28
      %s31 = sshll.u32 [#allocation5], 4
      %s32 = int_to_ptr.vmem [resolvable:$true] %s31
      %34 = dma.hbm_to_vmem [thread:$0]  %s1, 128, %s32, [#allocation6]
    $region9: #{tpu_custom_call.1} parent=1 // pred_fallthru
      _
    // Predicated region
    $region10: #{tpu_custom_call.1} parent=1 // pred_check
      _
    $region11: #{tpu_custom_call.1} parent=1 // pred_check_branch
      %36 = sbr.rel (0) target = $region13
    $region12: #{tpu_custom_call.1} parent=1 // pred_region
      %s38 = ssub.s32 128, 128
      %39 = vsyncadd [#allocation6], %s38
      %s41 = sshll.u32 [#allocation7], 4
      %s42 = int_to_ptr.vmem [resolvable:$true] %s41
      %44 = dma.hbm_to_vmem [thread:$0]  %s2, 128, %s42, [#allocation6]
    $region13: #{tpu_custom_call.1} parent=1 // pred_fallthru
      _
    // Predicated region
    $region14: #{tpu_custom_call.1} parent=1 // pred_check
      _
    $region15: #{tpu_custom_call.1} parent=1 // pred_check_branch
      %46 = sbr.rel (0) target = $region17
    $region16: #{tpu_custom_call.1} parent=1 // pred_region
      _
    $region17: #{tpu_custom_call.1} parent=1 // pred_fallthru
      _
    // Predicated region
    $region18: #{tpu_custom_call.1} parent=1 // pred_check
      _
    $region19: #{tpu_custom_call.1} parent=1 // pred_check_branch
      %48 = sbr.rel (0) target = $region21
    $region20: #{tpu_custom_call.1} parent=1 // pred_region
      %49 = dma.done [#allocation3], 128
    $region21: #{tpu_custom_call.1} parent=1 // pred_fallthru
      _
    // Predicated region
    $region22: #{tpu_custom_call.1} parent=1 // pred_check
      _
    $region23: #{tpu_custom_call.1} parent=1 // pred_check_branch
      %51 = sbr.rel (0) target = $region25
    $region24: #{tpu_custom_call.1} parent=1 // pred_region
      %52 = dma.done [#allocation6], 128
    $region25: #{tpu_custom_call.1} parent=1 // pred_fallthru
      _
    // Predicated region
    $region26: #{tpu_custom_call.1} parent=1 // pred_check
      _
    $region27: #{tpu_custom_call.1} parent=1 // pred_check_branch
      %54 = sbr.rel (0) target = $region29
    $region28: #{tpu_custom_call.1} parent=1 // pred_region
      %55 = dma.done [#allocation6], 128
    $region29: #{tpu_custom_call.1} parent=1 // pred_fallthru
      _
    %v57 = vld [vmem:[#allocation2] sm:$0xff]
    %v58 = vld [vmem:[#allocation5] sm:$0xff]
    %v59 = vsub.f32 %v57, %v58
    %v60 = vpack.c.bf16 %v59, %v59
    %v61 = vunpack.c.l.bf16 %v60
    %v62 = vsub.f32 %v59, %v61
    %v63 = vpack.c.bf16 %v62, %v62
    %v64 = vld [vmem:[#allocation7] sm:$0xff]
    %v65 = vld [vmem:[%s3] sm:$0xff]
    %v67 = vunpack.c.l.b16 %v64
    %v68 = vunpack.c.h.b16 %v64
    %v69 = vpack.c.b16 %v67, %v67
    %v70 = vpack.c.b16 %v68, %v68
    %vm71 = vcmask 64512
    %v73 = vsel %vm71, %v63, 0
    %vm75 = vcmask 1043456
    %v77 = vsel %vm75, %v69, 0
    %v80 = vsel %vm75, %v70, 0
    %82 = vmatprep.subr.bf16.mxu0 %v80
    %83 = vmatpush1.bf16.msra.mxu0 %v77
    %84 = vmatprep.subr.bf16.mxu0 0
    %85 = vmatpush1.bf16.msra.mxu0 0
    %86 = vmatprep.subr.bf16.mxu0 0
    %87 = vmatpush1.bf16.msra.mxu0 0
    %88 = vmatprep.subr.bf16.mxu0 0
    %89 = vmatpush1.bf16.msra.mxu0 0
    %90 = vmatprep.subr.bf16.mxu0 0
    %91 = vmatpush1.bf16.msra.mxu0 0
    %92 = vmatprep.subr.bf16.mxu0 0
    %93 = vmatpush1.bf16.msra.mxu0 0
    %94 = vmatprep.subr.bf16.mxu0 0
    %95 = vmatpush1.bf16.msra.mxu0 0
    %96 = vmatprep.subr.bf16.mxu0 0
    %97 = vmatpush1.bf16.msra.mxu0 0
    %98 = vmatprep.subr.bf16.mxu0 0
    %99 = vmatpush1.bf16.msra.mxu0 0
    %100 = vmatprep.subr.bf16.mxu0 0
    %101 = vmatpush1.bf16.msra.mxu0 0
    %102 = vmatprep.subr.bf16.mxu0 0
    %103 = vmatpush1.bf16.msra.mxu0 0
    %104 = vmatprep.subr.bf16.mxu0 0
    %105 = vmatpush1.bf16.msra.mxu0 0
    %106 = vmatprep.subr.bf16.mxu0 0
    %107 = vmatpush1.bf16.msra.mxu0 0
    %108 = vmatprep.subr.bf16.mxu0 0
    %109 = vmatpush1.bf16.msra.mxu0 0
    %110 = vmatprep.subr.bf16.mxu0 0
    %111 = vmatpush1.bf16.msra.mxu0 0
    %112 = vmatprep.subr.bf16.mxu0 0
    %113 = vmatpush1.bf16.msra.mxu0 0
    %114 = vmatprep.mubr.bf16.mxu0 0
    %115 = vmatmul.mubr.bf16.gmra.mrb[0].mxu0 %v73
    %v116 = vpop.f32.mrb[0].mxu0
    %v117 = vadd.f32 0.0, %v116
    %v118 = vpop.f32.mrb[0].mxu0
    %v119 = vadd.f32 0.0, %v118
    %v120 = vpop.f32.mrb[0].mxu0
    %v121 = vpop.f32.mrb[0].mxu0
    %122 = vdwg.mxu0
    %v124 = vsel %vm71, %v60, 0
    %126 = vmatprep.subr.bf16.mxu0 %v80
    %127 = vmatpush1.bf16.msra.mxu0 %v77
    %128 = vmatprep.subr.bf16.mxu0 0
    %129 = vmatpush1.bf16.msra.mxu0 0
    %130 = vmatprep.subr.bf16.mxu0 0
    %131 = vmatpush1.bf16.msra.mxu0 0
    %132 = vmatprep.subr.bf16.mxu0 0
    %133 = vmatpush1.bf16.msra.mxu0 0
    %134 = vmatprep.subr.bf16.mxu0 0
    %135 = vmatpush1.bf16.msra.mxu0 0
    %136 = vmatprep.subr.bf16.mxu0 0
    %137 = vmatpush1.bf16.msra.mxu0 0
    %138 = vmatprep.subr.bf16.mxu0 0
    %139 = vmatpush1.bf16.msra.mxu0 0
    %140 = vmatprep.subr.bf16.mxu0 0
    %141 = vmatpush1.bf16.msra.mxu0 0
    %142 = vmatprep.subr.bf16.mxu0 0
    %143 = vmatpush1.bf16.msra.mxu0 0
    %144 = vmatprep.subr.bf16.mxu0 0
    %145 = vmatpush1.bf16.msra.mxu0 0
    %146 = vmatprep.subr.bf16.mxu0 0
    %147 = vmatpush1.bf16.msra.mxu0 0
    %148 = vmatprep.subr.bf16.mxu0 0
    %149 = vmatpush1.bf16.msra.mxu0 0
    %150 = vmatprep.subr.bf16.mxu0 0
    %151 = vmatpush1.bf16.msra.mxu0 0
    %152 = vmatprep.subr.bf16.mxu0 0
    %153 = vmatpush1.bf16.msra.mxu0 0
    %154 = vmatprep.subr.bf16.mxu0 0
    %155 = vmatpush1.bf16.msra.mxu0 0
    %156 = vmatprep.subr.bf16.mxu0 0
    %157 = vmatpush1.bf16.msra.mxu0 0
    %158 = vmatprep.mubr.bf16.mxu0 0
    %159 = vmatmul.mubr.bf16.gmra.mrb[0].mxu0 %v124
    %v160 = vpop.f32.mrb[0].mxu0
    %v161 = vadd.f32 %v117, %v160
    %v162 = vpop.f32.mrb[0].mxu0
    %v163 = vadd.f32 %v119, %v162
    %v164 = vpop.f32.mrb[0].mxu0
    %v165 = vpop.f32.mrb[0].mxu0
    %166 = vdwg.mxu0
    %v168 = vunpack.c.l.b16 %v65
    %v169 = vunpack.c.h.b16 %v65
    %v170 = vpack.c.b16 %v168, %v168
    %v171 = vpack.c.b16 %v169, %v169
    %v173 = vsel %vm75, %v170, 0
    %v176 = vsel %vm75, %v171, 0
    %178 = vmatprep.subr.bf16.mxu0 %v176
    %179 = vmatpush1.bf16.msra.mxu0 %v173
    %180 = vmatprep.subr.bf16.mxu0 0
    %181 = vmatpush1.bf16.msra.mxu0 0
    %182 = vmatprep.subr.bf16.mxu0 0
    %183 = vmatpush1.bf16.msra.mxu0 0
    %184 = vmatprep.subr.bf16.mxu0 0
    %185 = vmatpush1.bf16.msra.mxu0 0
    %186 = vmatprep.subr.bf16.mxu0 0
    %187 = vmatpush1.bf16.msra.mxu0 0
    %188 = vmatprep.subr.bf16.mxu0 0
    %189 = vmatpush1.bf16.msra.mxu0 0
    %190 = vmatprep.subr.bf16.mxu0 0
    %191 = vmatpush1.bf16.msra.mxu0 0
    %192 = vmatprep.subr.bf16.mxu0 0
    %193 = vmatpush1.bf16.msra.mxu0 0
    %194 = vmatprep.subr.bf16.mxu0 0
    %195 = vmatpush1.bf16.msra.mxu0 0
    %196 = vmatprep.subr.bf16.mxu0 0
    %197 = vmatpush1.bf16.msra.mxu0 0
    %198 = vmatprep.subr.bf16.mxu0 0
    %199 = vmatpush1.bf16.msra.mxu0 0
    %200 = vmatprep.subr.bf16.mxu0 0
    %201 = vmatpush1.bf16.msra.mxu0 0
    %202 = vmatprep.subr.bf16.mxu0 0
    %203 = vmatpush1.bf16.msra.mxu0 0
    %204 = vmatprep.subr.bf16.mxu0 0
    %205 = vmatpush1.bf16.msra.mxu0 0
    %206 = vmatprep.subr.bf16.mxu0 0
    %207 = vmatpush1.bf16.msra.mxu0 0
    %208 = vmatprep.subr.bf16.mxu0 0
    %209 = vmatpush1.bf16.msra.mxu0 0
    %210 = vmatprep.mubr.bf16.mxu0 0
    %211 = vmatmul.mubr.bf16.gmra.mrb[0].mxu0 %v124
    %v212 = vpop.f32.mrb[0].mxu0
    %v213 = vadd.f32 0.0, %v212
    %v214 = vpop.f32.mrb[0].mxu0
    %v215 = vadd.f32 0.0, %v214
    %v216 = vpop.f32.mrb[0].mxu0
    %v217 = vpop.f32.mrb[0].mxu0
    %218 = vdwg.mxu0
    %v219 = vadd.f32 %v161, %v213
    %v220 = vadd.f32 %v163, %v215
    %v221 = vmul.f32 %v219, %v219
    %v222 = vmul.f32 %v220, %v220
    %v223 = vadd.f32 %v221, %v222
    %v224 = vrsqrt.pop %v223
    %v225 = vmul.f32 %v223, %v224
    %vm226 = vcmp.eq.f32.partialorder %v223, inf
    %v227 = vsel %vm226, %v223, %v225
    %vm228 = vcmp.eq.f32.partialorder %v223, 0.0
    %v229 = vand.u32 %v223, 2147483648
    %v230 = vsel %vm228, %v229, %v227
    %v231 = vmul.f32 %v223, %v230
    %232 = vadd.xlane.f32.xlu0 %v231
    %v233 = vpop.xlane.xlu0 %232
    %v234 = vrot.slane %v233, 4
    %v235 = vadd.f32 %v233, %v234
    %v236 = vrot.slane %v235, 2
    %v237 = vadd.f32 %v235, %v236
    %v238 = vrot.slane %v237, 1
    %v239 = vadd.f32 %v237, %v238
    %s240 = vtos %v239
    %241 = vmax.xlane.f32.xlu0 %v223
    %v242 = vpop.xlane.xlu0 %241
    %v243 = vrot.slane %v242, 4
    %v244 = vmax.f32 %v242, %v243
    %v245 = vrot.slane %v244, 2
    %v246 = vmax.f32 %v244, %v245
    %v247 = vrot.slane %v246, 1
    %v248 = vmax.f32 %v246, %v247
    %s249 = vtos %v248
    %p250 = scmp.eq.s32.totalorder 0, 0
    // Predicated region
    $region30: #{tpu_custom_call.1} parent=1 // pred_check
      %p251 = pneg %p250
    $region31: #{tpu_custom_call.1} parent=1 // pred_check_branch
      %253 = sbr.rel (%p251) target = $region33
    $region32: #{tpu_custom_call.1} parent=1 // pred_region
      %254 = vst [vmem:[#allocation8] sm:$0x1] 0.0
      %255 = vst [vmem:[#allocation9] sm:$0x1] 0.0
    $region33: #{tpu_custom_call.1} parent=1 // pred_fallthru
      _
    %v256 = vld [vmem:[#allocation8] sm:$0x1]
    %v257 = vstv %s240
    %v258 = vadd.f32 %v256, %v257
    %259 = vst [vmem:[#allocation8] sm:$0x1] %v258
    %v260 = vld [vmem:[#allocation9] sm:$0x1]
    %v261 = vstv %s249
    %v262 = vmax.f32 %v260, %v261
    %263 = vst [vmem:[#allocation9] sm:$0x1] %v262
    // Predicated region
    $region34: #{tpu_custom_call.1} parent=1 // pred_check
      _
    $region35: #{tpu_custom_call.1} parent=1 // pred_check_branch
      %265 = sbr.rel (0) target = $region37
    $region36: #{tpu_custom_call.1} parent=1 // pred_region
      %s267 = ssub.s32 16, 16
      %268 = vsyncadd [#allocation4], %s267
      %s270 = sshll.u32 [#allocation8], 4
      %s271 = int_to_ptr.vmem [resolvable:$true] %s270
      %273 = dma.vmem_to_hbm [thread:$0]  %s271, 16, %s4, [#allocation4]
    $region37: #{tpu_custom_call.1} parent=1 // pred_fallthru
      _
    // Predicated region
    $region38: #{tpu_custom_call.1} parent=1 // pred_check
      _
    $region39: #{tpu_custom_call.1} parent=1 // pred_check_branch
      %275 = sbr.rel (0) target = $region41
    $region40: #{tpu_custom_call.1} parent=1 // pred_region
      %s277 = ssub.s32 16, 16
      %278 = vsyncadd [#allocation10], %s277
      %s280 = sshll.u32 [#allocation9], 4
      %s281 = int_to_ptr.vmem [resolvable:$true] %s280
      %283 = dma.vmem_to_hbm [thread:$0]  %s281, 16, %s5, [#allocation10]
    $region41: #{tpu_custom_call.1} parent=1 // pred_fallthru
      _
    // Predicated region
    $region42: #{tpu_custom_call.1} parent=1 // pred_check
      _
    $region43: #{tpu_custom_call.1} parent=1 // pred_check_branch
      %285 = sbr.rel (0) target = $region45
    $region44: #{tpu_custom_call.1} parent=1 // pred_region
      %286 = dma.done [#allocation4], 16
    $region45: #{tpu_custom_call.1} parent=1 // pred_fallthru
      _
    // Predicated region
    $region46: #{tpu_custom_call.1} parent=1 // pred_check
      _
    $region47: #{tpu_custom_call.1} parent=1 // pred_check_branch
      %288 = sbr.rel (0) target = $region49
    $region48: #{tpu_custom_call.1} parent=1 // pred_region
      %289 = dma.done [#allocation10], 16
    $region49: #{tpu_custom_call.1} parent=1 // pred_fallthru
      _
    %290 = vsyncpa [#allocation3], 1
    %291 = vsyncpa [#allocation6], 1
    %292 = vsyncpa [#allocation4], 1
    %293 = vsyncpa [#allocation10], 1

</llo_original>
